<compile_context>
chip_gen: v7x
topology: tpu7x:2x2x1
jax: 0.10.0
libtpu: 0.0.40
codegen_flags: <defaults>
</compile_context>

<pallas_src>
import functools

import jax
import jax.numpy as jnp
from jax.experimental import pallas as pl
from jax.experimental.pallas import tpu as pltpu


def _lca_kernel(x_ref, w_ref, b_ref, m_ref, o_ref, *, K, W):
    """One (batch, channel-block) tile per grid step.

    x_ref : (1, Cblk, HW)   input planes, flattened H*W on the lane axis
    w_ref : (Cblk, K*K)     depthwise conv taps with BN scale folded in
    b_ref : (Cblk, 1)       folded BN bias
    m_ref : (K*K, HW)       per-tap boundary mask in bf16 (1 inside, 0 at pads)
    o_ref : (1, Cblk, HW)
    """
    HW = x_ref.shape[2]
    p = K // 2

    # Hoisted tile-wide loads (one load each, sliced inside the tap loop).
    x = x_ref[0].astype(jnp.float32)                  # (Cblk, HW)
    w = w_ref[...].astype(jnp.float32)                # (Cblk, K*K)
    b = b_ref[...].astype(jnp.float32)                # (Cblk, 1)
    m = m_ref[...].astype(jnp.float32)                # (K*K, HW)

    acc = jnp.zeros_like(x)

    # Depthwise conv = sum over K*K taps of (lane-rolled plane) * mask * tap.
    # The roll goes to the XLU (separate VLIW slot); the mask kills both the
    # roll wrap-around and the SAME zero-padding boundary in one mul.
    for dh in range(K):
        for dw in range(K):
            t = dh * K + dw
            s = (dh - p) * W + (dw - p)               # shift in flat H*W space
            w_tap = w[:, t:t + 1]                      # (Cblk, 1)
            if s == 0:
                # Centre tap: no shift and an all-ones mask -> skip both.
                acc = acc + x * w_tap
            else:
                shifted = pltpu.roll(x, (-s) % HW, axis=1)
                m_tap = m[t:t + 1, :]                  # (1, HW)
                acc = acc + shifted * m_tap * w_tap

    # Folded BatchNorm bias (scale already folded into w) + SiLU.
    y = acc + b
    sig = pl.reciprocal(1.0 + jnp.exp(-y), approx=False)
    o_ref[0] = (y * sig).astype(o_ref.dtype)


def _pick_cblk(N, C, HW):
    """Channel block size.

    Targets a ~2 MiB f32 (Cblk, HW) working block: large enough to amortize
    per-step overhead (HBM-roofline territory), small enough that the
    double-buffered in/out + unrolled-tap temporaries fit comfortably under a
    48 MiB VMEM cap on v7x (64 MiB physical per TensorCore).
    """
    budget = max(8, (2 * 1024 * 1024) // max(HW * 4, 1))
    cblk = C
    if C > budget:
        cblk = None
        for cand in (512, 256, 128, 64, 32, 16, 8):
            if cand <= budget and cand <= C and C % cand == 0:
                cblk = cand
                break
        if cblk is None:
            cblk = C  # no aligned divisor found; fall back to full C
    # v7x has 2 TensorCores: keep >= 2 grid steps on a parallel axis when the
    # shape allows it (splitting channels is only legal on 8-aligned blocks).
    if N == 1 and cblk == C:
        half = C // 2
        if half >= 8 and half % 8 == 0 and half <= budget:
            cblk = half
    return cblk


@functools.partial(jax.jit, static_argnames=("kernel_size", "eps"))
def local_context_attention(x, weight, gamma, beta, running_mean,
                            running_var, *, kernel_size=3, eps=1e-5):
    """Pallas implementation of LocalContextAttention.forward (eval mode).

    x      : (N, C, H, W) float32  (native PyTorch layout, kept throughout)
    weight : (C, 1, K, K) depthwise conv weight (groups=C, no bias)
    """
    N, C, H, W = x.shape
    K = kernel_size
    p = K // 2
    HW = H * W

    # Free reshape of contiguous memory; no transpose, no pad.
    x_flat = x.reshape(N, C, HW)

    # Fold eval-mode BN into the conv taps (scale) and a per-channel bias.
    scale = gamma / jnp.sqrt(running_var + eps)
    bias = (beta - running_mean * scale).astype(jnp.float32).reshape(C, 1)
    w_folded = (weight[:, 0, :, :].reshape(C, K * K)
                * scale[:, None]).astype(jnp.float32)

    # Per-tap validity masks in flattened H*W space (compile-time constants):
    # encode the conv's SAME zero padding and kill roll wrap-around.  Values
    # are exactly 0/1 so bf16 storage is lossless and halves the footprint.
    rr = jnp.arange(H, dtype=jnp.int32)[:, None]
    cc = jnp.arange(W, dtype=jnp.int32)[None, :]
    masks = []
    for dh in range(K):
        for dw in range(K):
            oh, ow = dh - p, dw - p
            m = ((rr + oh >= 0) & (rr + oh < H) &
                 (cc + ow >= 0) & (cc + ow < W))
            masks.append(m.reshape(HW))
    mask = jnp.stack(masks, axis=0).astype(jnp.bfloat16)       # (K*K, HW)

    Cblk = _pick_cblk(N, C, HW)
    grid = (N, C // Cblk)

    kernel = functools.partial(_lca_kernel, K=K, W=W)

    itemsize = jnp.dtype(x.dtype).itemsize
    cost = pl.CostEstimate(
        flops=2 * K * K * N * C * HW,
        transcendentals=N * C * HW,
        bytes_accessed=2 * N * C * HW * itemsize
        + C * K * K * 4 + C * 4 + K * K * HW * 2,
    )

    out_flat = pl.pallas_call(
        kernel,
        out_shape=jax.ShapeDtypeStruct((N, C, HW), x.dtype),
        grid=grid,
        in_specs=[
            pl.BlockSpec((1, Cblk, HW), lambda n, cb: (n, cb, 0)),
            pl.BlockSpec((Cblk, K * K), lambda n, cb: (cb, 0)),
            pl.BlockSpec((Cblk, 1), lambda n, cb: (cb, 0)),
            pl.BlockSpec((K * K, HW), lambda n, cb: (0, 0)),
        ],
        out_specs=pl.BlockSpec((1, Cblk, HW), lambda n, cb: (n, cb, 0)),
        compiler_params=pltpu.CompilerParams(
            dimension_semantics=("parallel", "parallel"),
            vmem_limit_bytes=48 * 1024 * 1024),
        cost_estimate=cost,
    )(x_flat, w_folded, bias, mask)

    return out_flat.reshape(N, C, H, W)


def _reference(x, weight, gamma, beta, mean, var, eps=1e-5):
    """Pure-JAX reference (depthwise conv + eval BN + SiLU), NCHW."""
    C = x.shape[1]
    y = jax.lax.conv_general_dilated(
        x, weight, window_strides=(1, 1), padding="SAME",
        feature_group_count=C,
        dimension_numbers=("NCHW", "OIHW", "NCHW"))
    scale = gamma / jnp.sqrt(var + eps)
    shift = beta - mean * scale
    y = y * scale[None, :, None, None] + shift[None, :, None, None]
    return y * jax.nn.sigmoid(y)


if __name__ == "__main__":
    key = jax.random.PRNGKey(0)
    k_x, k_w, k_g, k_b, k_m, k_v = jax.random.split(key, 6)

    N, C, H, W = 2, 4, 16, 16
    K = 3

    x = jax.random.normal(k_x, (N, C, H, W), dtype=jnp.float32)
    # Depthwise conv weight: (C, 1, K, K), no bias (matches nn.Conv2d groups=C).
    weight = jax.random.normal(k_w, (C, 1, K, K), dtype=jnp.float32) * 0.2
    gamma = 1.0 + 0.1 * jax.random.normal(k_g, (C,), dtype=jnp.float32)
    beta = 0.1 * jax.random.normal(k_b, (C,), dtype=jnp.float32)
    running_mean = 0.1 * jax.random.normal(k_m, (C,), dtype=jnp.float32)
    running_var = jnp.abs(jax.random.normal(k_v, (C,), dtype=jnp.float32)) + 0.5

    out = local_context_attention(x, weight, gamma, beta, running_mean,
                                  running_var, kernel_size=K)
    out = jax.block_until_ready(out)

    ref = _reference(x, weight, gamma, beta, running_mean, running_var)
    assert out.shape == (N, C, H, W)
    assert jnp.allclose(out, ref, atol=1e-5, rtol=1e-5), "mismatch vs reference"

    print("KERNEL_OK")
</pallas_src>

<mosaic_0001>
module attributes {stable_mosaic.version = 11 : i64} {
  func.func @_lca_kernel(%arg0: i32, %arg1: i32, %arg2: memref<1x4x256xf32, #tpu.memory_space<vmem>>, %arg3: memref<4x9xf32, #tpu.memory_space<vmem>>, %arg4: memref<4x1xf32, #tpu.memory_space<vmem>>, %arg5: memref<9x256xbf16, #tpu.memory_space<vmem>>, %arg6: memref<1x4x256xf32, #tpu.memory_space<vmem>>) attributes {dimension_semantics = [#tpu.dimension_semantics<parallel>, #tpu.dimension_semantics<parallel>], iteration_bounds = array<i64: 2, 1>, scalar_prefetch = 0 : i64, scratch_operands = 0 : i64, tpu.core_type = #tpu.core_type<tc>, window_params = [{transform_indices = @transform_0, window_bounds = array<i64: 1, 4, 256>}, {transform_indices = @transform_1, window_bounds = array<i64: 4, 9>}, {transform_indices = @transform_2, window_bounds = array<i64: 4, 1>}, {pipeline_mode = #tpu.pipeline_mode<synchronous>, transform_indices = @transform_3, window_bounds = array<i64: 9, 256>}, {transform_indices = @transform_4, window_bounds = array<i64: 1, 4, 256>}]} {
    %c0 = arith.constant 0 : index
    %c0_0 = arith.constant 0 : index
    %c0_1 = arith.constant 0 : index
    %0 = vector.load %arg2[%c0, %c0_0, %c0_1] : memref<1x4x256xf32, #tpu.memory_space<vmem>>, vector<1x4x256xf32>
    %1 = vector.shape_cast %0 : vector<1x4x256xf32> to vector<4x256xf32>
    %c0_2 = arith.constant 0 : index
    %c0_3 = arith.constant 0 : index
    %2 = vector.load %arg3[%c0_2, %c0_3] : memref<4x9xf32, #tpu.memory_space<vmem>>, vector<4x9xf32>
    %c0_4 = arith.constant 0 : index
    %c0_5 = arith.constant 0 : index
    %3 = vector.load %arg4[%c0_4, %c0_5] : memref<4x1xf32, #tpu.memory_space<vmem>>, vector<4x1xf32>
    %c0_6 = arith.constant 0 : index
    %c0_7 = arith.constant 0 : index
    %4 = vector.load %arg5[%c0_6, %c0_7] : memref<9x256xbf16, #tpu.memory_space<vmem>>, vector<9x256xbf16>
    %5 = arith.extf %4 : vector<9x256xbf16> to vector<9x256xf32>
    %cst = arith.constant 0.000000e+00 : f32
    %6 = vector.broadcast %cst : f32 to vector<4x256xf32>
    %7 = vector.extract_strided_slice %2 {offsets = [0, 0], sizes = [4, 1], strides = [1, 1]} : vector<4x9xf32> to vector<4x1xf32>
    %c17_i32 = arith.constant 17 : i32
    %8 = tpu.dynamic_rotate %1 by %c17_i32 dim 1 : vector<4x256xf32>, i32 -> vector<4x256xf32>
    %9 = vector.extract_strided_slice %5 {offsets = [0, 0], sizes = [1, 256], strides = [1, 1]} : vector<9x256xf32> to vector<1x256xf32>
    %10 = vector.broadcast %9 : vector<1x256xf32> to vector<4x256xf32>
    %11 = arith.mulf %8, %10 : vector<4x256xf32>
    %12 = vector.broadcast %7 : vector<4x1xf32> to vector<4x256xf32>
    %13 = arith.mulf %11, %12 : vector<4x256xf32>
    %14 = arith.addf %6, %13 : vector<4x256xf32>
    %15 = vector.extract_strided_slice %2 {offsets = [0, 1], sizes = [4, 1], strides = [1, 1]} : vector<4x9xf32> to vector<4x1xf32>
    %c16_i32 = arith.constant 16 : i32
    %16 = tpu.dynamic_rotate %1 by %c16_i32 dim 1 : vector<4x256xf32>, i32 -> vector<4x256xf32>
    %17 = vector.extract_strided_slice %5 {offsets = [1, 0], sizes = [1, 256], strides = [1, 1]} : vector<9x256xf32> to vector<1x256xf32>
    %18 = vector.broadcast %17 : vector<1x256xf32> to vector<4x256xf32>
    %19 = arith.mulf %16, %18 : vector<4x256xf32>
    %20 = vector.broadcast %15 : vector<4x1xf32> to vector<4x256xf32>
    %21 = arith.mulf %19, %20 : vector<4x256xf32>
    %22 = arith.addf %14, %21 : vector<4x256xf32>
    %23 = vector.extract_strided_slice %2 {offsets = [0, 2], sizes = [4, 1], strides = [1, 1]} : vector<4x9xf32> to vector<4x1xf32>
    %c15_i32 = arith.constant 15 : i32
    %24 = tpu.dynamic_rotate %1 by %c15_i32 dim 1 : vector<4x256xf32>, i32 -> vector<4x256xf32>
    %25 = vector.extract_strided_slice %5 {offsets = [2, 0], sizes = [1, 256], strides = [1, 1]} : vector<9x256xf32> to vector<1x256xf32>
    %26 = vector.broadcast %25 : vector<1x256xf32> to vector<4x256xf32>
    %27 = arith.mulf %24, %26 : vector<4x256xf32>
    %28 = vector.broadcast %23 : vector<4x1xf32> to vector<4x256xf32>
    %29 = arith.mulf %27, %28 : vector<4x256xf32>
    %30 = arith.addf %22, %29 : vector<4x256xf32>
    %31 = vector.extract_strided_slice %2 {offsets = [0, 3], sizes = [4, 1], strides = [1, 1]} : vector<4x9xf32> to vector<4x1xf32>
    %c1_i32 = arith.constant 1 : i32
    %32 = tpu.dynamic_rotate %1 by %c1_i32 dim 1 : vector<4x256xf32>, i32 -> vector<4x256xf32>
    %33 = vector.extract_strided_slice %5 {offsets = [3, 0], sizes = [1, 256], strides = [1, 1]} : vector<9x256xf32> to vector<1x256xf32>
    %34 = vector.broadcast %33 : vector<1x256xf32> to vector<4x256xf32>
    %35 = arith.mulf %32, %34 : vector<4x256xf32>
    %36 = vector.broadcast %31 : vector<4x1xf32> to vector<4x256xf32>
    %37 = arith.mulf %35, %36 : vector<4x256xf32>
    %38 = arith.addf %30, %37 : vector<4x256xf32>
    %39 = vector.extract_strided_slice %2 {offsets = [0, 4], sizes = [4, 1], strides = [1, 1]} : vector<4x9xf32> to vector<4x1xf32>
    %40 = vector.broadcast %39 : vector<4x1xf32> to vector<4x256xf32>
    %41 = arith.mulf %1, %40 : vector<4x256xf32>
    %42 = arith.addf %38, %41 : vector<4x256xf32>
    %43 = vector.extract_strided_slice %2 {offsets = [0, 5], sizes = [4, 1], strides = [1, 1]} : vector<4x9xf32> to vector<4x1xf32>
    %c255_i32 = arith.constant 255 : i32
    %44 = tpu.dynamic_rotate %1 by %c255_i32 dim 1 : vector<4x256xf32>, i32 -> vector<4x256xf32>
    %45 = vector.extract_strided_slice %5 {offsets = [5, 0], sizes = [1, 256], strides = [1, 1]} : vector<9x256xf32> to vector<1x256xf32>
    %46 = vector.broadcast %45 : vector<1x256xf32> to vector<4x256xf32>
    %47 = arith.mulf %44, %46 : vector<4x256xf32>
    %48 = vector.broadcast %43 : vector<4x1xf32> to vector<4x256xf32>
    %49 = arith.mulf %47, %48 : vector<4x256xf32>
    %50 = arith.addf %42, %49 : vector<4x256xf32>
    %51 = vector.extract_strided_slice %2 {offsets = [0, 6], sizes = [4, 1], strides = [1, 1]} : vector<4x9xf32> to vector<4x1xf32>
    %c241_i32 = arith.constant 241 : i32
    %52 = tpu.dynamic_rotate %1 by %c241_i32 dim 1 : vector<4x256xf32>, i32 -> vector<4x256xf32>
    %53 = vector.extract_strided_slice %5 {offsets = [6, 0], sizes = [1, 256], strides = [1, 1]} : vector<9x256xf32> to vector<1x256xf32>
    %54 = vector.broadcast %53 : vector<1x256xf32> to vector<4x256xf32>
    %55 = arith.mulf %52, %54 : vector<4x256xf32>
    %56 = vector.broadcast %51 : vector<4x1xf32> to vector<4x256xf32>
    %57 = arith.mulf %55, %56 : vector<4x256xf32>
    %58 = arith.addf %50, %57 : vector<4x256xf32>
    %59 = vector.extract_strided_slice %2 {offsets = [0, 7], sizes = [4, 1], strides = [1, 1]} : vector<4x9xf32> to vector<4x1xf32>
    %c240_i32 = arith.constant 240 : i32
    %60 = tpu.dynamic_rotate %1 by %c240_i32 dim 1 : vector<4x256xf32>, i32 -> vector<4x256xf32>
    %61 = vector.extract_strided_slice %5 {offsets = [7, 0], sizes = [1, 256], strides = [1, 1]} : vector<9x256xf32> to vector<1x256xf32>
    %62 = vector.broadcast %61 : vector<1x256xf32> to vector<4x256xf32>
    %63 = arith.mulf %60, %62 : vector<4x256xf32>
    %64 = vector.broadcast %59 : vector<4x1xf32> to vector<4x256xf32>
    %65 = arith.mulf %63, %64 : vector<4x256xf32>
    %66 = arith.addf %58, %65 : vector<4x256xf32>
    %67 = vector.extract_strided_slice %2 {offsets = [0, 8], sizes = [4, 1], strides = [1, 1]} : vector<4x9xf32> to vector<4x1xf32>
    %c239_i32 = arith.constant 239 : i32
    %68 = tpu.dynamic_rotate %1 by %c239_i32 dim 1 : vector<4x256xf32>, i32 -> vector<4x256xf32>
    %69 = vector.extract_strided_slice %5 {offsets = [8, 0], sizes = [1, 256], strides = [1, 1]} : vector<9x256xf32> to vector<1x256xf32>
    %70 = vector.broadcast %69 : vector<1x256xf32> to vector<4x256xf32>
    %71 = arith.mulf %68, %70 : vector<4x256xf32>
    %72 = vector.broadcast %67 : vector<4x1xf32> to vector<4x256xf32>
    %73 = arith.mulf %71, %72 : vector<4x256xf32>
    %74 = arith.addf %66, %73 : vector<4x256xf32>
    %75 = vector.broadcast %3 : vector<4x1xf32> to vector<4x256xf32>
    %76 = arith.addf %74, %75 : vector<4x256xf32>
    %cst_8 = arith.constant 0.000000e+00 : f32
    %77 = vector.broadcast %cst_8 : f32 to vector<4x256xf32>
    %78 = arith.subf %77, %76 : vector<4x256xf32>
    %79 = math.exp %78 : vector<4x256xf32>
    %cst_9 = arith.constant 1.000000e+00 : f32
    %80 = vector.broadcast %cst_9 : f32 to vector<4x256xf32>
    %81 = arith.addf %80, %79 : vector<4x256xf32>
    %82 = tpu.reciprocal %81 : vector<4x256xf32> -> vector<4x256xf32>
    %83 = arith.mulf %76, %82 : vector<4x256xf32>
    %c0_10 = arith.constant 0 : index
    %c0_11 = arith.constant 0 : index
    %c0_12 = arith.constant 0 : index
    %84 = vector.load %arg6[%c0_10, %c0_11, %c0_12] : memref<1x4x256xf32, #tpu.memory_space<vmem>>, vector<1x4x256xf32>
    %85 = vector.shape_cast %84 : vector<1x4x256xf32> to vector<4x256xf32>
    %86 = vector.shape_cast %83 : vector<4x256xf32> to vector<1x4x256xf32>
    tpu.vector_store %arg6[%c0_10, %c0_11, %c0_12], %86 {strides = array<i32>} : memref<1x4x256xf32, #tpu.memory_space<vmem>>, vector<1x4x256xf32>,
    return
  }
  func.func @transform_0(%arg0: i32, %arg1: i32) -> (i32, i32, i32) {
    %c0_i32 = arith.constant 0 : i32
    %c0_i32_0 = arith.constant 0 : i32
    return %arg0, %arg1, %c0_i32 : i32, i32, i32
  }
  func.func @transform_1(%arg0: i32, %arg1: i32) -> (i32, i32) {
    %c0_i32 = arith.constant 0 : i32
    %c0_i32_0 = arith.constant 0 : i32
    return %arg1, %c0_i32 : i32, i32
  }
  func.func @transform_2(%arg0: i32, %arg1: i32) -> (i32, i32) {
    %c0_i32 = arith.constant 0 : i32
    %c0_i32_0 = arith.constant 0 : i32
    return %arg1, %c0_i32 : i32, i32
  }
  func.func @transform_3(%arg0: i32, %arg1: i32) -> (i32, i32) {
    %c0_i32 = arith.constant 0 : i32
    %c0_i32_0 = arith.constant 0 : i32
    %c0_i32_1 = arith.constant 0 : i32
    return %c0_i32, %c0_i32_0 : i32, i32
  }
  func.func @transform_4(%arg0: i32, %arg1: i32) -> (i32, i32, i32) {
    %c0_i32 = arith.constant 0 : i32
    %c0_i32_0 = arith.constant 0 : i32
    return %arg0, %arg1, %c0_i32 : i32, i32, i32
  }
}

</mosaic_0001>

<llo_original>
// kernel: local_context_attention.1
$region0: #{local_context_attention.1}
  #allocation0 [shape = 'u32[]', space=smem, size = 0x4, offset = 0x4, fixed_abs, tag = 'smem constant byte address 0x4 - core index']
  #allocation1 [shape = 'u32[144,128]{1,0:T(1,128)}', space=vmem, size = 0x12000, scoped, tag = 'internal scratch']
  %s0 = inlined_call_operand.vmem [shape: f32[2,4,256], index: 0, kind: input, shape index: {}]
  %s1 = inlined_call_operand.vmem [shape: f32[4,9], index: 1, kind: input, shape index: {}]
  %s2 = inlined_call_operand.vmem [shape: f32[4,1], index: 2, kind: input, shape index: {}]
  %s3 = inlined_call_operand.vmem [shape: bf16[9,256], index: 3, kind: input, shape index: {}]
  %s4 = inlined_call_operand.vmem [shape: f32[2,4,256], index: 4, kind: output, shape index: {}]
  %s5 = sld [smem:[#allocation0]]
  $region49: #{local_context_attention.1} parent=0
    _
  %s7 = ssub.s32 1, %s5
  %s8 = scalar_select 0, %s7, %s5
  loop: start=0, step=1, limit=4
  $region2: #{local_context_attention.1} parent=0 // loop_pre_header
    _
  $region3: #{local_context_attention.1} parent=0 // loop_header
    %s10 = sphi 0, %s14
    %p11 = scmp.ge.s32.totalorder %s10, 4
    %s17 = sphi 0, %s29
    %s18 = sphi 0, %s25
    %s19 = sphi 0, %s17
    %s20 = sphi 0, %s18
    %s21 = sphi 0, %s19
    %s22 = sphi 0, %s20
    %s34 = sphi 0, %s36
    %s37 = sphi 0, %s34
    %s38 = sphi 0, %s37
    %s54 = sphi 0, %s38
    %s60 = sphi 0, %s62
    %s63 = sphi 0, %s60
    %s64 = sphi 0, %s63
    %s80 = sphi 0, %s64
    %s86 = sphi 0, %s88
    %s89 = sphi 0, %s86
    %s90 = sphi 0, %s89
    %s106 = sphi 0, %s90
    %s110 = sphi 0, %s110
    %s112 = sphi 0, %s110
    %s113 = sphi 0, %s112
    %s127 = sphi 0, %s113
    %s135 = sphi 0, %s137
    %s138 = sphi 0, %s135
    %s139 = sphi 0, %s138
    %s155 = sphi 0, %s139
  $region4: #{local_context_attention.1} parent=0 // loop_header_branch
    %13 = sbr.rel (%p11) target = $region8
  $region5: #{local_context_attention.1} parent=0 // loop_body
    %s15 = ssub.s32 %s10, 1
    %s16 = ssub.s32 %s10, 2
    %s23 = sadd.s32 1, %s18
    %p24 = scmp.ge.s32.totalorder %s23, 1
    %s25 = scalar_select %p24, 0, %s23
    %s26 = sadd.s32 1, %s17
    %s27 = scalar_select %p24, %s26, %s17
    %p28 = scmp.ge.s32.totalorder %s27, 2
    %s29 = scalar_select %p28, 0, %s27
    %s30 = ssub.s32 %s17, %s29
    %s31 = ssub.s32 %s18, %s25
    %s32 = sor.u32 %s30, %s31
    %p33 = scmp.eq.s32.totalorder %s32, 0
    %s35 = sadd.s32 %s34, 1
    %s36 = scalar_select %p33, %s34, %s35
    %p39 = pneg %p33
    %p40 = scmp.eq.s32.totalorder %s10, 1
    %p41 = por %p39, %p40
    %p42 = scmp.ne.s32.totalorder %s34, %s37
    %p43 = scmp.eq.s32.totalorder %s10, 0
    %p44 = por %p42, %p43
    %p45 = scmp.ne.s32.totalorder %s34, %s37
    %p46 = scmp.eq.s32.totalorder %s15, 1
    %p47 = por %p45, %p46
    %p48 = scmp.ne.s32.totalorder %s37, %s38
    %p49 = scmp.eq.s32.totalorder %s15, 0
    %p50 = por %p48, %p49
    %p51 = scmp.ne.s32.totalorder %s37, %s38
    %p52 = scmp.eq.s32.totalorder %s16, 1
    %p53 = por %p51, %p52
    %p55 = scmp.ne.s32.totalorder %s38, %s54
    %p56 = scmp.eq.s32.totalorder %s16, 0
    %p57 = por %p55, %p56
    %s58 = ssub.s32 %s18, %s25
    %p59 = scmp.eq.s32.totalorder %s58, 0
    %s61 = sadd.s32 %s60, 1
    %s62 = scalar_select %p59, %s60, %s61
    %p65 = pneg %p59
    %p66 = scmp.eq.s32.totalorder %s10, 1
    %p67 = por %p65, %p66
    %p68 = scmp.ne.s32.totalorder %s60, %s63
    %p69 = scmp.eq.s32.totalorder %s10, 0
    %p70 = por %p68, %p69
    %p71 = scmp.ne.s32.totalorder %s60, %s63
    %p72 = scmp.eq.s32.totalorder %s15, 1
    %p73 = por %p71, %p72
    %p74 = scmp.ne.s32.totalorder %s63, %s64
    %p75 = scmp.eq.s32.totalorder %s15, 0
    %p76 = por %p74, %p75
    %p77 = scmp.ne.s32.totalorder %s63, %s64
    %p78 = scmp.eq.s32.totalorder %s16, 1
    %p79 = por %p77, %p78
    %p81 = scmp.ne.s32.totalorder %s64, %s80
    %p82 = scmp.eq.s32.totalorder %s16, 0
    %p83 = por %p81, %p82
    %s84 = ssub.s32 %s18, %s25
    %p85 = scmp.eq.s32.totalorder %s84, 0
    %s87 = sadd.s32 %s86, 1
    %s88 = scalar_select %p85, %s86, %s87
    %p91 = pneg %p85
    %p92 = scmp.eq.s32.totalorder %s10, 1
    %p93 = por %p91, %p92
    %p94 = scmp.ne.s32.totalorder %s86, %s89
    %p95 = scmp.eq.s32.totalorder %s10, 0
    %p96 = por %p94, %p95
    %p97 = scmp.ne.s32.totalorder %s86, %s89
    %p98 = scmp.eq.s32.totalorder %s15, 1
    %p99 = por %p97, %p98
    %p100 = scmp.ne.s32.totalorder %s89, %s90
    %p101 = scmp.eq.s32.totalorder %s15, 0
    %p102 = por %p100, %p101
    %p103 = scmp.ne.s32.totalorder %s89, %s90
    %p104 = scmp.eq.s32.totalorder %s16, 1
    %p105 = por %p103, %p104
    %p107 = scmp.ne.s32.totalorder %s90, %s106
    %p108 = scmp.eq.s32.totalorder %s16, 0
    %p109 = por %p107, %p108
    %s111 = sadd.s32 %s110, 1
    %p114 = scmp.eq.s32.totalorder %s10, 1
    %p115 = scmp.ne.s32.totalorder %s110, %s112
    %p116 = scmp.eq.s32.totalorder %s10, 0
    %p117 = por %p115, %p116
    %p118 = scmp.ne.s32.totalorder %s110, %s112
    %p119 = scmp.eq.s32.totalorder %s15, 1
    %p120 = por %p118, %p119
    %p121 = scmp.ne.s32.totalorder %s112, %s113
    %p122 = scmp.eq.s32.totalorder %s15, 0
    %p123 = por %p121, %p122
    %p124 = scmp.ne.s32.totalorder %s112, %s113
    %p125 = scmp.eq.s32.totalorder %s16, 1
    %p126 = por %p124, %p125
    %p128 = scmp.ne.s32.totalorder %s113, %s127
    %p129 = scmp.eq.s32.totalorder %s16, 0
    %p130 = por %p128, %p129
    %s131 = ssub.s32 %s17, %s29
    %s132 = ssub.s32 %s18, %s25
    %s133 = sor.u32 %s131, %s132
    %p134 = scmp.eq.s32.totalorder %s133, 0
    %s136 = sadd.s32 %s135, 1
    %s137 = scalar_select %p134, %s135, %s136
    %p140 = pneg %p134
    %p141 = scmp.eq.s32.totalorder %s10, 1
    %p142 = por %p140, %p141
    %p143 = scmp.ne.s32.totalorder %s135, %s138
    %p144 = scmp.eq.s32.totalorder %s10, 0
    %p145 = por %p143, %p144
    %p146 = scmp.ne.s32.totalorder %s135, %s138
    %p147 = scmp.eq.s32.totalorder %s15, 1
    %p148 = por %p146, %p147
    %p149 = scmp.ne.s32.totalorder %s138, %s139
    %p150 = scmp.eq.s32.totalorder %s15, 0
    %p151 = por %p149, %p150
    %p152 = scmp.ne.s32.totalorder %s138, %s139
    %p153 = scmp.eq.s32.totalorder %s16, 1
    %p154 = por %p152, %p153
    %p156 = scmp.ne.s32.totalorder %s139, %s155
    %p157 = scmp.eq.s32.totalorder %s16, 0
    %p158 = por %p156, %p157
    %p159 = scmp.le.s32.totalorder 1, %s10
    %p160 = scmp.lt.s32.totalorder %s10, 3
    %p161 = pnand %p159, %p160
    %p162 = pneg %p161
    // Predicated region
    $region9: #{local_context_attention.1} parent=5 // pred_check
      _
    $region10: #{local_context_attention.1} parent=5 // pred_check_branch
      %164 = sbr.rel (%p161) target = $region12
    $region11: #{local_context_attention.1} parent=5 // pred_region
      %s165 = ssub.s32 %s10, 1
      // Predicated region
      $region13: #{local_context_attention.1} parent=11 // pred_check
        %p166 = pneg %p76
      $region14: #{local_context_attention.1} parent=11 // pred_check_branch
        %168 = sbr.rel (%p166) target = $region16
      $region15: #{local_context_attention.1} parent=11 // pred_region
        %p169 = scmp.lt.s32.totalorder %s20, 0
        %s170 = scalar_select %p169, %s20, 0
        %s171 = smul.addr %s170, 4
        %s172 = scalar_lea.vmem %s1, %s171
      $region16: #{local_context_attention.1} parent=11 // pred_fallthru
        _
      // Predicated region
      $region17: #{local_context_attention.1} parent=11 // pred_check
        %p173 = pneg %p102
      $region18: #{local_context_attention.1} parent=11 // pred_check_branch
        %175 = sbr.rel (%p173) target = $region20
      $region19: #{local_context_attention.1} parent=11 // pred_region
        %p176 = scmp.lt.s32.totalorder %s20, 0
        %s177 = scalar_select %p176, %s20, 0
        %s178 = smul.addr %s177, 4
        %s179 = scalar_lea.vmem %s2, %s178
      $region20: #{local_context_attention.1} parent=11 // pred_fallthru
        _
      // Predicated region
      $region21: #{local_context_attention.1} parent=11 // pred_check
        %p180 = pneg %p123
      $region22: #{local_context_attention.1} parent=11 // pred_check_branch
        %182 = sbr.rel (%p180) target = $region24
      $region23: #{local_context_attention.1} parent=11 // pred_region
        _
      $region24: #{local_context_attention.1} parent=11 // pred_fallthru
        _
    $region12: #{local_context_attention.1} parent=5 // pred_fallthru
      _
    %p183 = scmp.lt.s32.totalorder %s10, 2
    // Predicated region
    $region25: #{local_context_attention.1} parent=5 // pred_check
      %p184 = pneg %p183
    $region26: #{local_context_attention.1} parent=5 // pred_check_branch
      %186 = sbr.rel (%p184) target = $region28
    $region27: #{local_context_attention.1} parent=5 // pred_region
      // Predicated region
      $region29: #{local_context_attention.1} parent=27 // pred_check
        %p187 = pneg %p44
      $region30: #{local_context_attention.1} parent=27 // pred_check_branch
        %189 = sbr.rel (%p187) target = $region32
      $region31: #{local_context_attention.1} parent=27 // pred_region
        %p190 = scmp.lt.s32.totalorder %s17, 1
        %s191 = scalar_select %p190, %s17, 1
        %p192 = scmp.lt.s32.totalorder %s18, 0
        %s193 = scalar_select %p192, %s18, 0
        %s194 = smul.addr %s193, 2
        %s195 = smul.addr %s191, 2
        %s196 = sadd.s32 %s194, %s195
        %s197 = smul.addr %s196, 4
        %s198 = scalar_lea.vmem %s0, %s197
      $region32: #{local_context_attention.1} parent=27 // pred_fallthru
        _
    $region28: #{local_context_attention.1} parent=5 // pred_fallthru
      _
    %p199 = scmp.le.s32.totalorder 1, %s10
    %p200 = scmp.lt.s32.totalorder %s10, 3
    %p201 = pnand %p199, %p200
    %p202 = pneg %p201
    // Predicated region
    $region33: #{local_context_attention.1} parent=5 // pred_check
      _
    $region34: #{local_context_attention.1} parent=5 // pred_check_branch
      %204 = sbr.rel (%p201) target = $region36
    $region35: #{local_context_attention.1} parent=5 // pred_region
      %s205 = ssub.s32 %s10, 1
      %p206 = scmp.lt.s32.totalorder %s19, 1
      %s207 = scalar_select %p206, %s19, 1
      %p208 = scmp.lt.s32.totalorder %s20, 0
      %s209 = scalar_select %p208, %s20, 0
      %s210 = smul.addr %s209, 2
      %s211 = smul.addr %s207, 2
      %s212 = sadd.s32 %s210, %s211
      %s213 = smul.addr %s212, 4
      %s214 = scalar_lea.vmem %s0, %s213
      %p215 = pneg %p50
      %p216 = pneg %p47
      %p217 = scmp.lt.s32.totalorder %s20, 0
      %s218 = scalar_select %p217, %s20, 0
      %s219 = smul.addr %s218, 4
      %s220 = scalar_lea.vmem %s1, %s219
      %p221 = pneg %p76
      %p222 = pneg %p73
      %p223 = scmp.lt.s32.totalorder %s20, 0
      %s224 = scalar_select %p223, %s20, 0
      %s225 = smul.addr %s224, 4
      %s226 = scalar_lea.vmem %s2, %s225
      %p227 = pneg %p102
      %p228 = pneg %p99
      %p229 = pneg %p123
      %p230 = pneg %p120
      %p231 = pneg %p151
      %p232 = pneg %p148
      %p233 = scmp.lt.s32.totalorder %s19, 1
      %s234 = scalar_select %p233, %s19, 1
      %p235 = scmp.lt.s32.totalorder %s20, 0
      %s236 = scalar_select %p235, %s20, 0
      %s237 = smul.addr %s236, 2
      %s238 = smul.addr %s234, 2
      %s239 = sadd.s32 %s237, %s238
      %s240 = smul.addr %s239, 4
      %s241 = scalar_lea.vmem %s4, %s240
      %p242 = scmp.lt.s32.totalorder %s19, 1
      %s243 = scalar_select %p242, %s19, 1
      %p244 = scmp.lt.s32.totalorder %s20, 0
      %s245 = scalar_select %p244, %s20, 0
      %s246 = smul.addr %s245, 2
      %s247 = smul.addr %s243, 2
      %s248 = sadd.s32 %s246, %s247
      %s249 = smul.addr %s248, 4
      %s250 = scalar_lea.vmem %s0, %s249
      %p251 = scmp.lt.s32.totalorder %s20, 0
      %s252 = scalar_select %p251, %s20, 0
      %s253 = smul.addr %s252, 4
      %s254 = scalar_lea.vmem %s1, %s253
      %p255 = scmp.lt.s32.totalorder %s20, 0
      %s256 = scalar_select %p255, %s20, 0
      %s257 = smul.addr %s256, 4
      %s258 = scalar_lea.vmem %s2, %s257
      %p259 = scmp.lt.s32.totalorder %s19, 1
      %s260 = scalar_select %p259, %s19, 1
      %p261 = scmp.lt.s32.totalorder %s20, 0
      %s262 = scalar_select %p261, %s20, 0
      %s263 = smul.addr %s262, 2
      %s264 = smul.addr %s260, 2
      %s265 = sadd.s32 %s263, %s264
      %s266 = smul.addr %s265, 4
      %s267 = scalar_lea.vmem %s4, %s266
      %v268 = vld [vmem:[%s250] sm:$0xff]
      %v269 = vld [vmem:[%s254] sm:$0xf]
      %v270 = vld [vmem:[%s258] sm:$0xf]
      %v271 = vld [vmem:[%s3] sm:$0xff]
      %v272 = vld [vmem:[%s3 + $0x8] sm:$0x11]
      %v273 = vunpack.c.l.bf16 %v271
      %v274 = vunpack.c.h.bf16 %v271
      %v275 = vunpack.c.l.bf16 %v272
      %v276 = vunpack.c.h.bf16 %v272
      %v278 = vcombine.high %v268, %v268
      %280 = vrot.lane.b32.xlu0 %v268, 17
      %v281 = vpop.permute.xlu0 %280
      %282 = vrot.lane.b32.xlu0 %v278, 17
      %v283 = vpop.permute.xlu0 %282
      %v284 = vlaneseq
      %v285 = vand.u32 %v284, 127
      %vm286 = vcmp.lt.s32.totalorder %v285, 17
      %v287 = vsel %vm286, %v281, %v283
      %v288 = vsel %vm286, %v283, %v281
      %v289 = vlaneseq
      %v290 = vshrl.u32 %v289, 7
      %v291 = vsub.s32 0, %v290
      %v292 = vrot.slane %v273, %v291
      %v293 = vlaneseq
      %v294 = vshrl.u32 %v293, 7
      %v295 = vsub.s32 0, %v294
      %v296 = vrot.slane %v274, %v295
      %v297 = vmul.f32 %v288, %v292
      %v298 = vmul.f32 %v287, %v296
      %300 = vset.pattern.permute.xlu0 0
      %301 = vperm.xlu0 %300, %v269
      %v302 = vpop.permute.xlu0 %301
      %v304 = vmul.f32 %v297, %v302
      %v305 = vmul.f32 %v298, %v302
      %v306 = vadd.f32 %v304, 0.0
      %v307 = vadd.f32 %v305, 0.0
      %308 = vrot.lane.b32.xlu0 %v268, 16
      %v309 = vpop.permute.xlu0 %308
      %310 = vrot.lane.b32.xlu0 %v278, 16
      %v311 = vpop.permute.xlu0 %310
      %vm312 = vcmp.lt.s32.totalorder %v285, 16
      %v313 = vsel %vm312, %v309, %v311
      %v314 = vsel %vm312, %v311, %v309
      %v315 = vlaneseq
      %v316 = vshrl.u32 %v315, 7
      %v317 = vsub.s32 1, %v316
      %v318 = vrot.slane %v273, %v317
      %v319 = vlaneseq
      %v320 = vshrl.u32 %v319, 7
      %v321 = vsub.s32 1, %v320
      %v322 = vrot.slane %v274, %v321
      %v323 = vmul.f32 %v314, %v318
      %v324 = vmul.f32 %v313, %v322
      %325 = vset.pattern.permute.xlu0 1
      %326 = vperm.xlu0 %325, %v269
      %v327 = vpop.permute.xlu0 %326
      %v329 = vmul.f32 %v323, %v327
      %v330 = vmul.f32 %v324, %v327
      %v331 = vadd.f32 %v306, %v329
      %v332 = vadd.f32 %v307, %v330
      %333 = vrot.lane.b32.xlu0 %v268, 15
      %v334 = vpop.permute.xlu0 %333
      %335 = vrot.lane.b32.xlu0 %v278, 15
      %v336 = vpop.permute.xlu0 %335
      %vm337 = vcmp.lt.s32.totalorder %v285, 15
      %v338 = vsel %vm337, %v334, %v336
      %v339 = vsel %vm337, %v336, %v334
      %v340 = vlaneseq
      %v341 = vshrl.u32 %v340, 7
      %v342 = vsub.s32 2, %v341
      %v343 = vrot.slane %v273, %v342
      %v344 = vlaneseq
      %v345 = vshrl.u32 %v344, 7
      %v346 = vsub.s32 2, %v345
      %v347 = vrot.slane %v274, %v346
      %v348 = vmul.f32 %v339, %v343
      %v349 = vmul.f32 %v338, %v347
      %350 = vset.pattern.permute.xlu0 2
      %351 = vperm.xlu0 %350, %v269
      %v352 = vpop.permute.xlu0 %351
      %v354 = vmul.f32 %v348, %v352
      %v355 = vmul.f32 %v349, %v352
      %v356 = vadd.f32 %v331, %v354
      %v357 = vadd.f32 %v332, %v355
      %358 = vrot.lane.b32.xlu0 %v268, 1
      %v359 = vpop.permute.xlu0 %358
      %360 = vrot.lane.b32.xlu0 %v278, 1
      %v361 = vpop.permute.xlu0 %360
      %vm362 = vcmp.lt.s32.totalorder %v285, 1
      %v363 = vsel %vm362, %v359, %v361
      %v364 = vsel %vm362, %v361, %v359
      %v365 = vlaneseq
      %v366 = vshrl.u32 %v365, 7
      %v367 = vsub.s32 3, %v366
      %v368 = vrot.slane %v273, %v367
      %v369 = vlaneseq
      %v370 = vshrl.u32 %v369, 7
      %v371 = vsub.s32 3, %v370
      %v372 = vrot.slane %v274, %v371
      %v373 = vmul.f32 %v364, %v368
      %v374 = vmul.f32 %v363, %v372
      %375 = vset.pattern.permute.xlu0 3
      %376 = vperm.xlu0 %375, %v269
      %v377 = vpop.permute.xlu0 %376
      %v379 = vmul.f32 %v373, %v377
      %v380 = vmul.f32 %v374, %v377
      %v381 = vadd.f32 %v356, %v379
      %v382 = vadd.f32 %v357, %v380
      %383 = vset.pattern.permute.xlu0 4
      %384 = vperm.xlu0 %383, %v269
      %v385 = vpop.permute.xlu0 %384
      %v387 = vunpack.c.l.s4 839922192
      %v388 = vunpack.c.0.s8 %v387
      %v389 = vlaneseq
      %v390 = vshrl.u32 %v389, 7
      %v391 = vsub.s32 %v388, %v390
      %v392 = vrot.slane %v385, %v391
      %v394 = vmul.f32 %v268, %v392
      %v396 = vcombine.high %v394, %v394
      %v398 = vadd.f32 %v381, %v394
      %v399 = vadd.f32 %v382, %v396
      %400 = vrot.lane.b32.xlu0 %v268, 127
      %v401 = vpop.permute.xlu0 %400
      %402 = vrot.lane.b32.xlu0 %v278, 127
      %v403 = vpop.permute.xlu0 %402
      %vm404 = vcmp.lt.s32.totalorder %v285, 127
      %v405 = vsel %vm404, %v401, %v403
      %v406 = vsel %vm404, %v403, %v401
      %v407 = vlaneseq
      %v408 = vshrl.u32 %v407, 7
      %v409 = vsub.s32 5, %v408
      %v410 = vrot.slane %v273, %v409
      %v411 = vlaneseq
      %v412 = vshrl.u32 %v411, 7
      %v413 = vsub.s32 5, %v412
      %v414 = vrot.slane %v274, %v413
      %v415 = vmul.f32 %v405, %v410
      %v416 = vmul.f32 %v406, %v414
      %417 = vset.pattern.permute.xlu0 5
      %418 = vperm.xlu0 %417, %v269
      %v419 = vpop.permute.xlu0 %418
      %v421 = vmul.f32 %v415, %v419
      %v422 = vmul.f32 %v416, %v419
      %v423 = vadd.f32 %v398, %v421
      %v424 = vadd.f32 %v399, %v422
      %425 = vrot.lane.b32.xlu0 %v268, 113
      %v426 = vpop.permute.xlu0 %425
      %427 = vrot.lane.b32.xlu0 %v278, 113
      %v428 = vpop.permute.xlu0 %427
      %vm429 = vcmp.lt.s32.totalorder %v285, 113
      %v430 = vsel %vm429, %v426, %v428
      %v431 = vsel %vm429, %v428, %v426
      %v432 = vlaneseq
      %v433 = vshrl.u32 %v432, 7
      %v434 = vsub.s32 6, %v433
      %v435 = vrot.slane %v273, %v434
      %v436 = vlaneseq
      %v437 = vshrl.u32 %v436, 7
      %v438 = vsub.s32 6, %v437
      %v439 = vrot.slane %v274, %v438
      %v440 = vmul.f32 %v430, %v435
      %v441 = vmul.f32 %v431, %v439
      %442 = vset.pattern.permute.xlu0 6
      %443 = vperm.xlu0 %442, %v269
      %v444 = vpop.permute.xlu0 %443
      %v446 = vmul.f32 %v440, %v444
      %v447 = vmul.f32 %v441, %v444
      %v448 = vadd.f32 %v423, %v446
      %v449 = vadd.f32 %v424, %v447
      %450 = vrot.lane.b32.xlu0 %v268, 112
      %v451 = vpop.permute.xlu0 %450
      %452 = vrot.lane.b32.xlu0 %v278, 112
      %v453 = vpop.permute.xlu0 %452
      %vm454 = vcmp.lt.s32.totalorder %v285, 112
      %v455 = vsel %vm454, %v451, %v453
      %v456 = vsel %vm454, %v453, %v451
      %v457 = vlaneseq
      %v458 = vshrl.u32 %v457, 7
      %v459 = vsub.s32 7, %v458
      %v460 = vrot.slane %v273, %v459
      %v461 = vlaneseq
      %v462 = vshrl.u32 %v461, 7
      %v463 = vsub.s32 7, %v462
      %v464 = vrot.slane %v274, %v463
      %v465 = vmul.f32 %v455, %v460
      %v466 = vmul.f32 %v456, %v464
      %467 = vset.pattern.permute.xlu0 7
      %468 = vperm.xlu0 %467, %v269
      %v469 = vpop.permute.xlu0 %468
      %v471 = vmul.f32 %v465, %v469
      %v472 = vmul.f32 %v466, %v469
      %v473 = vadd.f32 %v448, %v471
      %v474 = vadd.f32 %v449, %v472
      %475 = vrot.lane.b32.xlu0 %v268, 111
      %v476 = vpop.permute.xlu0 %475
      %477 = vrot.lane.b32.xlu0 %v278, 111
      %v478 = vpop.permute.xlu0 %477
      %vm479 = vcmp.lt.s32.totalorder %v285, 111
      %v480 = vsel %vm479, %v476, %v478
      %v481 = vsel %vm479, %v478, %v476
      %v482 = vlaneseq
      %v483 = vshrl.u32 %v482, 7
      %v484 = vsub.s32 0, %v483
      %v485 = vrot.slane %v275, %v484
      %v486 = vlaneseq
      %v487 = vshrl.u32 %v486, 7
      %v488 = vsub.s32 0, %v487
      %v489 = vrot.slane %v276, %v488
      %v490 = vmul.f32 %v480, %v485
      %v491 = vmul.f32 %v481, %v489
      %492 = vset.pattern.permute.xlu0 8
      %493 = vperm.xlu0 %492, %v269
      %v494 = vpop.permute.xlu0 %493
      %v496 = vmul.f32 %v490, %v494
      %v497 = vmul.f32 %v491, %v494
      %v498 = vadd.f32 %v473, %v496
      %v499 = vadd.f32 %v474, %v497
      %501 = vset.pattern.permute.xlu0 0
      %502 = vperm.xlu0 %501, %v270
      %v503 = vpop.permute.xlu0 %502
      %v505 = vadd.f32 %v498, %v503
      %v506 = vadd.f32 %v499, %v503
      %v507 = vsub.f32 0.0, %v505
      %v508 = vsub.f32 0.0, %v506
      %v509 = vmul.f32 %v507, 1.442695
      %v510 = vpow.pop %v509
      %v511 = vmul.f32 %v508, 1.442695
      %v512 = vpow.pop %v511
      %v513 = vadd.f32 %v510, 1.0
      %v514 = vadd.f32 %v512, 1.0
      %v515 = vrcp.pop %v513
      %v516 = vrcp.pop %v514
      %v517 = vmul.f32 %v505, %v515
      %v518 = vmul.f32 %v506, %v516
      %v521 = vcombine.low %v517, %v518
      %523 = vst [vmem:[%s267] sm:$0xff] %v521
      %p524 = scmp.lt.s32.totalorder %s19, 1
      %s525 = scalar_select %p524, %s19, 1
      %p526 = scmp.lt.s32.totalorder %s20, 0
      %s527 = scalar_select %p526, %s20, 0
      %s528 = smul.addr %s527, 2
      %s529 = smul.addr %s525, 2
      %s530 = sadd.s32 %s528, %s529
      %s531 = smul.addr %s530, 4
      %s532 = scalar_lea.vmem %s4, %s531
      // Predicated region
      $region37: #{local_context_attention.1} parent=35 // pred_check
        %p533 = pneg %p148
      $region38: #{local_context_attention.1} parent=35 // pred_check_branch
        %535 = sbr.rel (%p533) target = $region40
      $region39: #{local_context_attention.1} parent=35 // pred_region
        _
      $region40: #{local_context_attention.1} parent=35 // pred_fallthru
        _
    $region36: #{local_context_attention.1} parent=5 // pred_fallthru
      _
    %p536 = scmp.le.s32.totalorder 2, %s10
    // Predicated region
    $region41: #{local_context_attention.1} parent=5 // pred_check
      %p537 = pneg %p536
    $region42: #{local_context_attention.1} parent=5 // pred_check_branch
      %539 = sbr.rel (%p537) target = $region44
    $region43: #{local_context_attention.1} parent=5 // pred_region
      %s540 = ssub.s32 %s10, 2
      // Predicated region
      $region45: #{local_context_attention.1} parent=43 // pred_check
        %p541 = pneg %p154
      $region46: #{local_context_attention.1} parent=43 // pred_check_branch
        %543 = sbr.rel (%p541) target = $region48
      $region47: #{local_context_attention.1} parent=43 // pred_region
        %p544 = scmp.lt.s32.totalorder %s21, 1
        %s545 = scalar_select %p544, %s21, 1
        %p546 = scmp.lt.s32.totalorder %s22, 0
        %s547 = scalar_select %p546, %s22, 0
        %s548 = smul.addr %s547, 2
        %s549 = smul.addr %s545, 2
        %s550 = sadd.s32 %s548, %s549
        %s551 = smul.addr %s550, 4
        %s552 = scalar_lea.vmem %s4, %s551
      $region48: #{local_context_attention.1} parent=43 // pred_fallthru
        _
    $region44: #{local_context_attention.1} parent=5 // pred_fallthru
      _
  $region6: #{local_context_attention.1} parent=0 // loop_footer
    %s14 = sadd.s32 1, %s10
  $region7: #{local_context_attention.1} parent=0 // loop_footer_branch
    %9 = sbr.rel target = $region3
  $region8: #{local_context_attention.1} parent=0 // loop_exit
    _

</llo_original>
